<compile_context>
chip_gen: v6e
topology: v6e:2x2x1
jax: 0.10.0
libtpu: 0.0.40
codegen_flags: <defaults>
</compile_context>

<pallas_src>
import functools
import math

import jax
import jax.numpy as jnp
from jax.experimental import pallas as pl
from jax.experimental.pallas import tpu as pltpu


def convblock_kernel(x_ref, p_ref, *refs, N, H, W, l_ins, l_out, eps):
    """Fused ConvBlock: len(l_ins) x (3x3 conv + BN(batch stats) + ReLU), VMEM-resident.

    x_ref : (N, H, l_ins[0])   lane-dense NHWC input slab ((W,C) merged, C zero-padded)
    p_ref : (l_out, l_out)     channel fold/broadcast matrix, P[i,j]=1 iff i%C==j%C
    refs  : per layer l: band (3*l_ins[l], l_out), gamma_lane (1, l_out), beta_lane (1, l_out);
            then o_ref (N*H, l_out); then pad_ref scratch (N, H+2, L).
    """
    n_layers = len(l_ins)
    o_ref = refs[3 * n_layers]
    pad_ref = refs[3 * n_layers + 1]
    rows = N * H
    inv_n = 1.0 / float(rows * W)

    # Persistent padded activation buffer: zero once (provides the "same"-padding
    # border rows for every layer); only interior rows are ever overwritten.
    pad_ref[...] = jnp.zeros_like(pad_ref)
    pad_ref[:, 1:H + 1, :l_ins[0]] = x_ref[...]

    p = p_ref[...]                                            # (l_out, l_out)

    for l in range(n_layers):
        l_in = l_ins[l]
        band = refs[3 * l][...]                               # (3*l_in, l_out) K-stacked bands
        g_lane = refs[3 * l + 1][...]                         # (1, l_out) gamma tiled over W
        b_lane = refs[3 * l + 2][...]                         # (1, l_out) beta  tiled over W

        # 3x3 conv == ONE MXU matmul: concat the three H-shifted windows along K.
        x0 = pad_ref[:, 0:H, :l_in].reshape(rows, l_in)
        x1 = pad_ref[:, 1:H + 1, :l_in].reshape(rows, l_in)
        x2 = pad_ref[:, 2:H + 2, :l_in].reshape(rows, l_in)
        xcat = jnp.concatenate([x0, x1, x2], axis=1)          # (rows, 3*l_in)
        acc = jnp.dot(xcat, band, preferred_element_type=jnp.float32)   # (rows, l_out)

        # BatchNorm2d (training-mode batch stats), two-pass / mean-centred.
        # Row-reduce first, then a tiny dot with P folds per-(w,c) lane sums to
        # per-channel sums AND broadcasts them back lane-dense in one shot.
        s = jnp.sum(acc, axis=0, keepdims=True)               # (1, l_out)
        mean_l = jnp.dot(s, p, preferred_element_type=jnp.float32) * inv_n
        cen = acc - mean_l
        ss = jnp.sum(cen * cen, axis=0, keepdims=True)        # (1, l_out)
        var_l = jnp.dot(ss, p, preferred_element_type=jnp.float32) * inv_n
        scale_l = g_lane * jax.lax.rsqrt(var_l + eps)         # EUP rsqrt, folded gamma

        y = jnp.maximum(cen * scale_l + b_lane, 0.0)          # BN + ReLU: one FMA + max

        if l + 1 < n_layers:
            pad_ref[:, 1:H + 1, :l_out] = y.reshape(N, H, l_out)
        else:
            o_ref[...] = y                                    # full-lane unmasked store


def _pad_channels(c, W, lane=128):
    """Smallest c' >= c with (W*c') % lane == 0 (makes slabs / matmul K lane-dense)."""
    step = lane // math.gcd(W, lane)
    return ((c + step - 1) // step) * step


def _build_banded_weights(w_hwio, W, cin_pad, cout_pad):
    """Repack (3,3,Cin,Cout) conv weights into one K-stacked band matrix
    (3*W*cin_pad, W*cout_pad).

    band[dy*W*cin_pad + win*cin_pad + ci, w*cout_pad + co] = w[dy, dx, ci, co]
    with win = w + dx - 1; out-of-range win are absent, realising the zero "same"
    padding along W.  Pure weight repacking done once in the wrapper.
    """
    _, _, cin, cout = w_hwio.shape
    w = jnp.zeros((3, 3, cin_pad, cout_pad), jnp.float32).at[:, :, :cin, :cout].set(
        w_hwio.astype(jnp.float32))
    bands = []
    for dy in range(3):
        m = jnp.zeros((W * cin_pad, W * cout_pad), jnp.float32)
        for dx in range(3):
            shift = jnp.eye(W, k=1 - dx, dtype=jnp.float32)   # selects win = w + dx - 1
            m = m + jnp.kron(shift, w[dy, dx])
        bands.append(m)
    return jnp.concatenate(bands, axis=0)                     # (3*W*cin_pad, W*cout_pad)


def conv_block_forward(x_nchw, params, eps=1e-5):
    """ConvBlock.forward: NCHW in, NCHW out (PyTorch convention). One fused pallas_call."""
    N, c0, H, W = x_nchw.shape
    cins = [w.shape[2] for (w, _, _) in params]
    couts = [w.shape[3] for (w, _, _) in params]
    assert c0 == cins[0]
    cout = couts[-1]
    assert all(c == cout for c in couts)

    cin0_pad = _pad_channels(cins[0], W)
    cout_pad = _pad_channels(cout, W)
    l_in0 = W * cin0_pad
    l_out = W * cout_pad
    l_ins = [l_in0] + [l_out] * (len(params) - 1)
    L = max(l_ins + [l_out])

    # Lane-dense input slab: NHWC with (W, C) merged; C zero-padded so W*C % 128 == 0.
    x_nhwc = jnp.transpose(x_nchw, (0, 2, 3, 1)).astype(jnp.float32)
    x_nhwc = jnp.pad(x_nhwc, ((0, 0), (0, 0), (0, 0), (0, cin0_pad - cins[0])))
    x_slab = x_nhwc.reshape(N, H, l_in0)

    # Channel fold/broadcast matrix (pure constant, hoisted out of the kernel).
    idx = jnp.arange(l_out)
    p_mat = (idx[:, None] % cout_pad == idx[None, :] % cout_pad).astype(jnp.float32)

    args = [x_slab, p_mat]
    cin_p = cin0_pad
    for (w, g, b) in params:
        args.append(_build_banded_weights(w, W, cin_p, cout_pad))
        g_p = jnp.ones((cout_pad,), jnp.float32).at[:cout].set(g.astype(jnp.float32))
        b_p = jnp.zeros((cout_pad,), jnp.float32).at[:cout].set(b.astype(jnp.float32))
        args.append(jnp.tile(g_p, W).reshape(1, l_out))       # lane-dense gamma
        args.append(jnp.tile(b_p, W).reshape(1, l_out))       # lane-dense beta
        cin_p = cout_pad

    kern = functools.partial(convblock_kernel, N=N, H=H, W=W,
                             l_ins=tuple(l_ins), l_out=l_out, eps=eps)
    out_slab = pl.pallas_call(
        kern,
        out_shape=jax.ShapeDtypeStruct((N * H, l_out), jnp.float32),
        in_specs=[pl.BlockSpec(memory_space=pltpu.MemorySpace.VMEM)] * len(args),
        out_specs=pl.BlockSpec(memory_space=pltpu.MemorySpace.VMEM),
        scratch_shapes=[pltpu.VMEM((N, H + 2, L), jnp.float32)],
    )(*args)

    out = out_slab.reshape(N, H, W, cout_pad)[..., :cout]     # strip padded channels
    return jnp.transpose(out, (0, 3, 1, 2))                   # -> NCHW


def init_conv_block_params(key, in_channels, out_channels, repeat):
    """Deterministic synthetic params. Conv weight stored HWIO (3,3,Cin,Cout)."""
    params = []
    cin = in_channels
    for _ in range(repeat):
        key, kw, kg, kb = jax.random.split(key, 4)
        fan_in = cin * 3 * 3
        w = jax.random.normal(kw, (3, 3, cin, out_channels), jnp.float32) / jnp.sqrt(fan_in)
        gamma = 1.0 + 0.1 * jax.random.normal(kg, (out_channels,), jnp.float32)
        beta = 0.1 * jax.random.normal(kb, (out_channels,), jnp.float32)
        params.append((w, gamma, beta))
        cin = out_channels
    return params


def conv_block_reference(x_nchw, params, eps=1e-5):
    """Pure-JAX reference mirroring PyTorch semantics (train-mode BN), for sanity check."""
    x = x_nchw
    for w_hwio, g, b in params:
        w_oihw = jnp.transpose(w_hwio, (3, 2, 0, 1))
        y = jax.lax.conv_general_dilated(
            x, w_oihw, window_strides=(1, 1), padding="SAME",
            dimension_numbers=("NCHW", "OIHW", "NCHW"))
        mean = jnp.mean(y, axis=(0, 2, 3), keepdims=True)
        var = jnp.mean((y - mean) ** 2, axis=(0, 2, 3), keepdims=True)
        y = (y - mean) * jax.lax.rsqrt(var + eps)
        y = y * g.reshape(1, -1, 1, 1) + b.reshape(1, -1, 1, 1)
        x = jnp.maximum(y, 0.0)
    return x


if __name__ == "__main__":
    in_channels, out_channels, repeat = 4, 8, 2
    N, H, W = 2, 16, 16

    key = jax.random.PRNGKey(0)
    key, kx = jax.random.split(key)
    x = jax.random.normal(kx, (N, in_channels, H, W), jnp.float32)  # NCHW like PyTorch
    params = init_conv_block_params(key, in_channels, out_channels, repeat)

    out = jax.block_until_ready(conv_block_forward(x, params))
    ref = jax.block_until_ready(conv_block_reference(x, params))

    assert out.shape == (N, out_channels, H, W)
    max_err = float(jnp.max(jnp.abs(out - ref)))
    assert jnp.allclose(out, ref, atol=1e-4, rtol=1e-4), max_err

    print("KERNEL_OK")
</pallas_src>

<mosaic_0001>
module attributes {stable_mosaic.version = 11 : i64} {
  func.func @convblock_kernel(%arg0: memref<2x16x128xf32, #tpu.memory_space<vmem>>, %arg1: memref<128x128xf32, #tpu.memory_space<vmem>>, %arg2: memref<384x128xf32, #tpu.memory_space<vmem>>, %arg3: memref<1x128xf32, #tpu.memory_space<vmem>>, %arg4: memref<1x128xf32, #tpu.memory_space<vmem>>, %arg5: memref<384x128xf32, #tpu.memory_space<vmem>>, %arg6: memref<1x128xf32, #tpu.memory_space<vmem>>, %arg7: memref<1x128xf32, #tpu.memory_space<vmem>>, %arg8: memref<32x128xf32, #tpu.memory_space<vmem>>, %arg9: memref<2x18x128xf32, #tpu.memory_space<vmem>>) attributes {dimension_semantics = [], scalar_prefetch = 0 : i64, scratch_operands = 1 : i64, tpu.core_type = #tpu.core_type<tc>} {
    %cst = arith.constant 0.000000e+00 : f32
    %0 = vector.broadcast %cst : f32 to vector<2x18x128xf32>
    %c0 = arith.constant 0 : index
    %c0_0 = arith.constant 0 : index
    %c0_1 = arith.constant 0 : index
    %1 = vector.load %arg9[%c0, %c0_0, %c0_1] : memref<2x18x128xf32, #tpu.memory_space<vmem>>, vector<2x18x128xf32>
    tpu.vector_store %arg9[%c0, %c0_0, %c0_1], %0 {strides = array<i32>} : memref<2x18x128xf32, #tpu.memory_space<vmem>>, vector<2x18x128xf32>,
    %c0_2 = arith.constant 0 : index
    %c0_3 = arith.constant 0 : index
    %c0_4 = arith.constant 0 : index
    %2 = vector.load %arg0[%c0_2, %c0_3, %c0_4] : memref<2x16x128xf32, #tpu.memory_space<vmem>>, vector<2x16x128xf32>
    %c0_5 = arith.constant 0 : index
    %c1 = arith.constant 1 : index
    %c0_6 = arith.constant 0 : index
    %3 = vector.load %arg9[%c0_5, %c1, %c0_6] : memref<2x18x128xf32, #tpu.memory_space<vmem>>, vector<2x16x128xf32>
    tpu.vector_store %arg9[%c0_5, %c1, %c0_6], %2 {strides = array<i32>} : memref<2x18x128xf32, #tpu.memory_space<vmem>>, vector<2x16x128xf32>,
    %c0_7 = arith.constant 0 : index
    %c0_8 = arith.constant 0 : index
    %4 = vector.load %arg1[%c0_7, %c0_8] : memref<128x128xf32, #tpu.memory_space<vmem>>, vector<128x128xf32>
    %c0_9 = arith.constant 0 : index
    %c0_10 = arith.constant 0 : index
    %5 = vector.load %arg2[%c0_9, %c0_10] : memref<384x128xf32, #tpu.memory_space<vmem>>, vector<384x128xf32>
    %c0_11 = arith.constant 0 : index
    %c0_12 = arith.constant 0 : index
    %6 = vector.load %arg3[%c0_11, %c0_12] : memref<1x128xf32, #tpu.memory_space<vmem>>, vector<1x128xf32>
    %c0_13 = arith.constant 0 : index
    %c0_14 = arith.constant 0 : index
    %7 = vector.load %arg4[%c0_13, %c0_14] : memref<1x128xf32, #tpu.memory_space<vmem>>, vector<1x128xf32>
    %c0_15 = arith.constant 0 : index
    %c0_16 = arith.constant 0 : index
    %c0_17 = arith.constant 0 : index
    %8 = vector.load %arg9[%c0_15, %c0_16, %c0_17] : memref<2x18x128xf32, #tpu.memory_space<vmem>>, vector<2x16x128xf32>
    %9 = vector.shape_cast %8 : vector<2x16x128xf32> to vector<32x128xf32>
    %c0_18 = arith.constant 0 : index
    %c1_19 = arith.constant 1 : index
    %c0_20 = arith.constant 0 : index
    %10 = vector.load %arg9[%c0_18, %c1_19, %c0_20] : memref<2x18x128xf32, #tpu.memory_space<vmem>>, vector<2x16x128xf32>
    %11 = vector.shape_cast %10 : vector<2x16x128xf32> to vector<32x128xf32>
    %c0_21 = arith.constant 0 : index
    %c2 = arith.constant 2 : index
    %c0_22 = arith.constant 0 : index
    %12 = vector.load %arg9[%c0_21, %c2, %c0_22] : memref<2x18x128xf32, #tpu.memory_space<vmem>>, vector<2x16x128xf32>
    %13 = vector.shape_cast %12 : vector<2x16x128xf32> to vector<32x128xf32>
    %14 = tpu.concatenate %9, %11, %13 in 1 : vector<32x128xf32>, vector<32x128xf32>, vector<32x128xf32> -> vector<32x384xf32>
    %cst_23 = arith.constant dense<0.000000e+00> : vector<32x128xf32>
    %15 = tpu.matmul %14, %5, %cst_23 {dimension_numbers = #tpu.dot_dimension_numbers<[1], [0], [0], [1], [0, 0, 1, 1], [], []>} : vector<32x384xf32>, vector<384x128xf32>, vector<32x128xf32> -> vector<32x128xf32>
    %cst_24 = arith.constant dense<0.000000e+00> : vector<128xf32>
    %16 = vector.multi_reduction <add>, %15, %cst_24 [0] : vector<32x128xf32> to vector<128xf32>
    %17 = vector.shape_cast %16 : vector<128xf32> to vector<1x128xf32>
    %cst_25 = arith.constant dense<0.000000e+00> : vector<1x128xf32>
    %18 = tpu.matmul %17, %4, %cst_25 {dimension_numbers = #tpu.dot_dimension_numbers<[1], [0], [0], [1], [0, 0, 1, 1], [], []>} : vector<1x128xf32>, vector<128x128xf32>, vector<1x128xf32> -> vector<1x128xf32>
    %cst_26 = arith.constant 0.001953125 : f32
    %19 = vector.broadcast %cst_26 : f32 to vector<1x128xf32>
    %20 = arith.mulf %18, %19 : vector<1x128xf32>
    %21 = vector.broadcast %20 : vector<1x128xf32> to vector<32x128xf32>
    %22 = arith.subf %15, %21 : vector<32x128xf32>
    %23 = arith.mulf %22, %22 : vector<32x128xf32>
    %cst_27 = arith.constant dense<0.000000e+00> : vector<128xf32>
    %24 = vector.multi_reduction <add>, %23, %cst_27 [0] : vector<32x128xf32> to vector<128xf32>
    %25 = vector.shape_cast %24 : vector<128xf32> to vector<1x128xf32>
    %cst_28 = arith.constant dense<0.000000e+00> : vector<1x128xf32>
    %26 = tpu.matmul %25, %4, %cst_28 {dimension_numbers = #tpu.dot_dimension_numbers<[1], [0], [0], [1], [0, 0, 1, 1], [], []>} : vector<1x128xf32>, vector<128x128xf32>, vector<1x128xf32> -> vector<1x128xf32>
    %cst_29 = arith.constant 0.001953125 : f32
    %27 = vector.broadcast %cst_29 : f32 to vector<1x128xf32>
    %28 = arith.mulf %26, %27 : vector<1x128xf32>
    %cst_30 = arith.constant 9.99999974E-6 : f32
    %29 = vector.broadcast %cst_30 : f32 to vector<1x128xf32>
    %30 = arith.addf %28, %29 : vector<1x128xf32>
    %31 = math.rsqrt %30 : vector<1x128xf32>
    %32 = arith.mulf %6, %31 : vector<1x128xf32>
    %33 = vector.broadcast %32 : vector<1x128xf32> to vector<32x128xf32>
    %34 = arith.mulf %22, %33 : vector<32x128xf32>
    %35 = vector.broadcast %7 : vector<1x128xf32> to vector<32x128xf32>
    %36 = arith.addf %34, %35 : vector<32x128xf32>
    %cst_31 = arith.constant 0.000000e+00 : f32
    %37 = vector.broadcast %cst_31 : f32 to vector<32x128xf32>
    %38 = arith.maximumf %36, %37 : vector<32x128xf32>
    %39 = vector.shape_cast %38 : vector<32x128xf32> to vector<2x16x128xf32>
    %c0_32 = arith.constant 0 : index
    %c1_33 = arith.constant 1 : index
    %c0_34 = arith.constant 0 : index
    %40 = vector.load %arg9[%c0_32, %c1_33, %c0_34] : memref<2x18x128xf32, #tpu.memory_space<vmem>>, vector<2x16x128xf32>
    tpu.vector_store %arg9[%c0_32, %c1_33, %c0_34], %39 {strides = array<i32>} : memref<2x18x128xf32, #tpu.memory_space<vmem>>, vector<2x16x128xf32>,
    %c0_35 = arith.constant 0 : index
    %c0_36 = arith.constant 0 : index
    %41 = vector.load %arg5[%c0_35, %c0_36] : memref<384x128xf32, #tpu.memory_space<vmem>>, vector<384x128xf32>
    %c0_37 = arith.constant 0 : index
    %c0_38 = arith.constant 0 : index
    %42 = vector.load %arg6[%c0_37, %c0_38] : memref<1x128xf32, #tpu.memory_space<vmem>>, vector<1x128xf32>
    %c0_39 = arith.constant 0 : index
    %c0_40 = arith.constant 0 : index
    %43 = vector.load %arg7[%c0_39, %c0_40] : memref<1x128xf32, #tpu.memory_space<vmem>>, vector<1x128xf32>
    %c0_41 = arith.constant 0 : index
    %c0_42 = arith.constant 0 : index
    %c0_43 = arith.constant 0 : index
    %44 = vector.load %arg9[%c0_41, %c0_42, %c0_43] : memref<2x18x128xf32, #tpu.memory_space<vmem>>, vector<2x16x128xf32>
    %45 = vector.shape_cast %44 : vector<2x16x128xf32> to vector<32x128xf32>
    %c0_44 = arith.constant 0 : index
    %c1_45 = arith.constant 1 : index
    %c0_46 = arith.constant 0 : index
    %46 = vector.load %arg9[%c0_44, %c1_45, %c0_46] : memref<2x18x128xf32, #tpu.memory_space<vmem>>, vector<2x16x128xf32>
    %47 = vector.shape_cast %46 : vector<2x16x128xf32> to vector<32x128xf32>
    %c0_47 = arith.constant 0 : index
    %c2_48 = arith.constant 2 : index
    %c0_49 = arith.constant 0 : index
    %48 = vector.load %arg9[%c0_47, %c2_48, %c0_49] : memref<2x18x128xf32, #tpu.memory_space<vmem>>, vector<2x16x128xf32>
    %49 = vector.shape_cast %48 : vector<2x16x128xf32> to vector<32x128xf32>
    %50 = tpu.concatenate %45, %47, %49 in 1 : vector<32x128xf32>, vector<32x128xf32>, vector<32x128xf32> -> vector<32x384xf32>
    %cst_50 = arith.constant dense<0.000000e+00> : vector<32x128xf32>
    %51 = tpu.matmul %50, %41, %cst_50 {dimension_numbers = #tpu.dot_dimension_numbers<[1], [0], [0], [1], [0, 0, 1, 1], [], []>} : vector<32x384xf32>, vector<384x128xf32>, vector<32x128xf32> -> vector<32x128xf32>
    %cst_51 = arith.constant dense<0.000000e+00> : vector<128xf32>
    %52 = vector.multi_reduction <add>, %51, %cst_51 [0] : vector<32x128xf32> to vector<128xf32>
    %53 = vector.shape_cast %52 : vector<128xf32> to vector<1x128xf32>
    %cst_52 = arith.constant dense<0.000000e+00> : vector<1x128xf32>
    %54 = tpu.matmul %53, %4, %cst_52 {dimension_numbers = #tpu.dot_dimension_numbers<[1], [0], [0], [1], [0, 0, 1, 1], [], []>} : vector<1x128xf32>, vector<128x128xf32>, vector<1x128xf32> -> vector<1x128xf32>
    %cst_53 = arith.constant 0.001953125 : f32
    %55 = vector.broadcast %cst_53 : f32 to vector<1x128xf32>
    %56 = arith.mulf %54, %55 : vector<1x128xf32>
    %57 = vector.broadcast %56 : vector<1x128xf32> to vector<32x128xf32>
    %58 = arith.subf %51, %57 : vector<32x128xf32>
    %59 = arith.mulf %58, %58 : vector<32x128xf32>
    %cst_54 = arith.constant dense<0.000000e+00> : vector<128xf32>
    %60 = vector.multi_reduction <add>, %59, %cst_54 [0] : vector<32x128xf32> to vector<128xf32>
    %61 = vector.shape_cast %60 : vector<128xf32> to vector<1x128xf32>
    %cst_55 = arith.constant dense<0.000000e+00> : vector<1x128xf32>
    %62 = tpu.matmul %61, %4, %cst_55 {dimension_numbers = #tpu.dot_dimension_numbers<[1], [0], [0], [1], [0, 0, 1, 1], [], []>} : vector<1x128xf32>, vector<128x128xf32>, vector<1x128xf32> -> vector<1x128xf32>
    %cst_56 = arith.constant 0.001953125 : f32
    %63 = vector.broadcast %cst_56 : f32 to vector<1x128xf32>
    %64 = arith.mulf %62, %63 : vector<1x128xf32>
    %cst_57 = arith.constant 9.99999974E-6 : f32
    %65 = vector.broadcast %cst_57 : f32 to vector<1x128xf32>
    %66 = arith.addf %64, %65 : vector<1x128xf32>
    %67 = math.rsqrt %66 : vector<1x128xf32>
    %68 = arith.mulf %42, %67 : vector<1x128xf32>
    %69 = vector.broadcast %68 : vector<1x128xf32> to vector<32x128xf32>
    %70 = arith.mulf %58, %69 : vector<32x128xf32>
    %71 = vector.broadcast %43 : vector<1x128xf32> to vector<32x128xf32>
    %72 = arith.addf %70, %71 : vector<32x128xf32>
    %cst_58 = arith.constant 0.000000e+00 : f32
    %73 = vector.broadcast %cst_58 : f32 to vector<32x128xf32>
    %74 = arith.maximumf %72, %73 : vector<32x128xf32>
    %c0_59 = arith.constant 0 : index
    %c0_60 = arith.constant 0 : index
    %75 = vector.load %arg8[%c0_59, %c0_60] : memref<32x128xf32, #tpu.memory_space<vmem>>, vector<32x128xf32>
    tpu.vector_store %arg8[%c0_59, %c0_60], %74 {strides = array<i32>} : memref<32x128xf32, #tpu.memory_space<vmem>>, vector<32x128xf32>,
    return
  }
}

</mosaic_0001>

<llo_original>
// kernel: tpu_custom_call.1
$region0: #{tpu_custom_call.1}
  #allocation0 [shape = 'u32[]', space=smem, size = 0x4, offset = 0x4, fixed_abs, tag = 'smem constant byte address 0x4 - core index']
  #allocation1 [shape = 'u32[144,128]{1,0:T(1,128)}', space=vmem, size = 0x12000, scoped, tag = 'internal scratch']
  #allocation2 [shape = 'f32[2,18,128]{2,1,0:T(8,128)}', space=vmem, size = 0x6000, scoped, tag = 'scratch operand']
  %s0 = inlined_call_operand.hbm [shape: f32[2,16,128], index: 0, kind: input, shape index: {}]
  %s1 = inlined_call_operand.hbm [shape: f32[128,128], index: 1, kind: input, shape index: {}]
  %s2 = inlined_call_operand.hbm [shape: f32[384,128], index: 2, kind: input, shape index: {}]
  %s3 = inlined_call_operand.vmem [shape: f32[1,128], index: 3, kind: input, shape index: {}]
  %s4 = inlined_call_operand.vmem [shape: f32[1,128], index: 4, kind: input, shape index: {}]
  %s5 = inlined_call_operand.hbm [shape: f32[384,128], index: 5, kind: input, shape index: {}]
  %s6 = inlined_call_operand.vmem [shape: f32[1,128], index: 6, kind: input, shape index: {}]
  %s7 = inlined_call_operand.vmem [shape: f32[1,128], index: 7, kind: input, shape index: {}]
  %s8 = inlined_call_operand.hbm [shape: f32[32,128], index: 8, kind: output, shape index: {}]
  %s9 = sld [smem:[#allocation0]]
  $region58: #{tpu_custom_call.1} parent=0
    _
  %s11 = ssub.s32 1, %s9
  %s12 = scalar_select 0, %s11, %s9
  $region1: #{tpu_custom_call.1} parent=0
    #allocation3 [shape = 'u8[16384]{0}', space=vmem, size = 0x4000, scoped, tag = 'input window, operand 0, single buffered']
    #allocation4 [shape = 's32[1]{0}', space=sflag, size = 0x4, scoped, tag = 'scoped memory for tpu_custom_call.1']
    #allocation5 [shape = 's32[1]{0}', space=sflag, size = 0x4, scoped, tag = 'scoped memory for tpu_custom_call.1']
    #allocation6 [shape = 'u8[65536]{0}', space=vmem, size = 0x10000, scoped, tag = 'input window, operand 1, single buffered']
    #allocation7 [shape = 's32[1]{0}', space=sflag, size = 0x4, scoped, tag = 'scoped memory for tpu_custom_call.1']
    #allocation8 [shape = 'u8[196608]{0}', space=vmem, size = 0x30000, scoped, tag = 'input window, operand 2, single buffered']
    #allocation9 [shape = 'u8[196608]{0}', space=vmem, size = 0x30000, scoped, tag = 'input window, operand 5, single buffered']
    #allocation10 [shape = 's32[1]{0}', space=sflag, size = 0x4, scoped, tag = 'scoped memory for tpu_custom_call.1']
    #allocation11 [shape = 'u8[16384]{0}', space=vmem, size = 0x4000, scoped, tag = 'output window, operand 0, single buffered']
    %13 = vsyncpa [#allocation4], 0
    %14 = vsyncpa [#allocation7], 0
    %15 = vsyncpa [#allocation10], 0
    %16 = vsyncpa [#allocation5], 0
    // Predicated region
    $region2: #{tpu_custom_call.1} parent=1 // pred_check
      _
    $region3: #{tpu_custom_call.1} parent=1 // pred_check_branch
      %18 = sbr.rel (0) target = $region5
    $region4: #{tpu_custom_call.1} parent=1 // pred_region
      %s20 = ssub.s32 512, 512
      %21 = vsyncadd [#allocation4], %s20
      %s22 = sshll.u32 [#allocation3], 4
      %s23 = int_to_ptr.vmem [resolvable:$true] %s22
      %28 = dma.hbm_to_vmem [thread:$0]  %s0, 512, %s23, [#allocation4], 128, 128, 8
    $region5: #{tpu_custom_call.1} parent=1 // pred_fallthru
      _
    // Predicated region
    $region6: #{tpu_custom_call.1} parent=1 // pred_check
      _
    $region7: #{tpu_custom_call.1} parent=1 // pred_check_branch
      %30 = sbr.rel (0) target = $region9
    $region8: #{tpu_custom_call.1} parent=1 // pred_region
      %s32 = ssub.s32 2048, 2048
      %33 = vsyncadd [#allocation7], %s32
      %s34 = sshll.u32 [#allocation6], 4
      %s35 = int_to_ptr.vmem [resolvable:$true] %s34
      %40 = dma.hbm_to_vmem [thread:$0]  %s1, 2048, %s35, [#allocation7], 128, 128, 8
    $region9: #{tpu_custom_call.1} parent=1 // pred_fallthru
      _
    // Predicated region
    $region10: #{tpu_custom_call.1} parent=1 // pred_check
      _
    $region11: #{tpu_custom_call.1} parent=1 // pred_check_branch
      %42 = sbr.rel (0) target = $region13
    $region12: #{tpu_custom_call.1} parent=1 // pred_region
      %s44 = ssub.s32 6144, 6144
      %45 = vsyncadd [#allocation7], %s44
      %s46 = sshll.u32 [#allocation8], 4
      %s47 = int_to_ptr.vmem [resolvable:$true] %s46
      %52 = dma.hbm_to_vmem [thread:$0]  %s2, 6144, %s47, [#allocation7], 128, 128, 8
    $region13: #{tpu_custom_call.1} parent=1 // pred_fallthru
      _
    // Predicated region
    $region14: #{tpu_custom_call.1} parent=1 // pred_check
      _
    $region15: #{tpu_custom_call.1} parent=1 // pred_check_branch
      %54 = sbr.rel (0) target = $region17
    $region16: #{tpu_custom_call.1} parent=1 // pred_region
      _
    $region17: #{tpu_custom_call.1} parent=1 // pred_fallthru
      _
    // Predicated region
    $region18: #{tpu_custom_call.1} parent=1 // pred_check
      _
    $region19: #{tpu_custom_call.1} parent=1 // pred_check_branch
      %56 = sbr.rel (0) target = $region21
    $region20: #{tpu_custom_call.1} parent=1 // pred_region
      _
    $region21: #{tpu_custom_call.1} parent=1 // pred_fallthru
      _
    // Predicated region
    $region22: #{tpu_custom_call.1} parent=1 // pred_check
      _
    $region23: #{tpu_custom_call.1} parent=1 // pred_check_branch
      %58 = sbr.rel (0) target = $region25
    $region24: #{tpu_custom_call.1} parent=1 // pred_region
      %s60 = ssub.s32 6144, 6144
      %61 = vsyncadd [#allocation10], %s60
      %s62 = sshll.u32 [#allocation9], 4
      %s63 = int_to_ptr.vmem [resolvable:$true] %s62
      %68 = dma.hbm_to_vmem [thread:$0]  %s5, 6144, %s63, [#allocation10], 128, 128, 8
    $region25: #{tpu_custom_call.1} parent=1 // pred_fallthru
      _
    // Predicated region
    $region26: #{tpu_custom_call.1} parent=1 // pred_check
      _
    $region27: #{tpu_custom_call.1} parent=1 // pred_check_branch
      %70 = sbr.rel (0) target = $region29
    $region28: #{tpu_custom_call.1} parent=1 // pred_region
      _
    $region29: #{tpu_custom_call.1} parent=1 // pred_fallthru
      _
    // Predicated region
    $region30: #{tpu_custom_call.1} parent=1 // pred_check
      _
    $region31: #{tpu_custom_call.1} parent=1 // pred_check_branch
      %72 = sbr.rel (0) target = $region33
    $region32: #{tpu_custom_call.1} parent=1 // pred_region
      _
    $region33: #{tpu_custom_call.1} parent=1 // pred_fallthru
      _
    // Predicated region
    $region34: #{tpu_custom_call.1} parent=1 // pred_check
      _
    $region35: #{tpu_custom_call.1} parent=1 // pred_check_branch
      %74 = sbr.rel (0) target = $region37
    $region36: #{tpu_custom_call.1} parent=1 // pred_region
      %75 = dma.done [#allocation4], 512
    $region37: #{tpu_custom_call.1} parent=1 // pred_fallthru
      _
    // Predicated region
    $region38: #{tpu_custom_call.1} parent=1 // pred_check
      _
    $region39: #{tpu_custom_call.1} parent=1 // pred_check_branch
      %77 = sbr.rel (0) target = $region41
    $region40: #{tpu_custom_call.1} parent=1 // pred_region
      %78 = dma.done [#allocation7], 2048
    $region41: #{tpu_custom_call.1} parent=1 // pred_fallthru
      _
    // Predicated region
    $region42: #{tpu_custom_call.1} parent=1 // pred_check
      _
    $region43: #{tpu_custom_call.1} parent=1 // pred_check_branch
      %80 = sbr.rel (0) target = $region45
    $region44: #{tpu_custom_call.1} parent=1 // pred_region
      %81 = dma.done [#allocation7], 6144
    $region45: #{tpu_custom_call.1} parent=1 // pred_fallthru
      _
    // Predicated region
    $region46: #{tpu_custom_call.1} parent=1 // pred_check
      _
    $region47: #{tpu_custom_call.1} parent=1 // pred_check_branch
      %83 = sbr.rel (0) target = $region49
    $region48: #{tpu_custom_call.1} parent=1 // pred_region
      %84 = dma.done [#allocation10], 6144
    $region49: #{tpu_custom_call.1} parent=1 // pred_fallthru
      _
    %85 = vst [vmem:[#allocation2] sm:$0xff] 0.0
    %86 = vst [vmem:[#allocation2 + $0x8] sm:$0xff] 0.0
    %87 = vst [vmem:[#allocation2 + $0x10] sm:$0x3] 0.0
    %88 = vst [vmem:[#allocation2 + $0x18] sm:$0xff] 0.0
    %89 = vst [vmem:[#allocation2 + $0x20] sm:$0xff] 0.0
    %90 = vst [vmem:[#allocation2 + $0x28] sm:$0x3] 0.0
    %v91 = vld [vmem:[#allocation3] sm:$0xff]
    %v92 = vld [vmem:[#allocation3 + $0x8] sm:$0xff]
    %v93 = vld [vmem:[#allocation3 + $0x10] sm:$0xff]
    %v94 = vld [vmem:[#allocation3 + $0x18] sm:$0xff]
    %95 = vst [vmem:[#allocation2 + $0x1] sm:$0xff] %v91
    %96 = vst [vmem:[#allocation2 + $0x9] sm:$0xff] %v92
    %97 = vst [vmem:[#allocation2 + $0x19] sm:$0xff] %v93
    %98 = vst [vmem:[#allocation2 + $0x21] sm:$0xff] %v94
    %v99 = vld [vmem:[#allocation6] sm:$0xff]
    %v100 = vld [vmem:[#allocation6 + $0x8] sm:$0xff]
    %v101 = vld [vmem:[#allocation6 + $0x10] sm:$0xff]
    %v102 = vld [vmem:[#allocation6 + $0x18] sm:$0xff]
    %v103 = vld [vmem:[#allocation6 + $0x20] sm:$0xff]
    %v104 = vld [vmem:[#allocation6 + $0x28] sm:$0xff]
    %v105 = vld [vmem:[#allocation6 + $0x30] sm:$0xff]
    %v106 = vld [vmem:[#allocation6 + $0x38] sm:$0xff]
    %v107 = vld [vmem:[#allocation6 + $0x40] sm:$0xff]
    %v108 = vld [vmem:[#allocation6 + $0x48] sm:$0xff]
    %v109 = vld [vmem:[#allocation6 + $0x50] sm:$0xff]
    %v110 = vld [vmem:[#allocation6 + $0x58] sm:$0xff]
    %v111 = vld [vmem:[#allocation6 + $0x60] sm:$0xff]
    %v112 = vld [vmem:[#allocation6 + $0x68] sm:$0xff]
    %v113 = vld [vmem:[#allocation6 + $0x70] sm:$0xff]
    %v114 = vld [vmem:[#allocation6 + $0x78] sm:$0xff]
    %v115 = vld [vmem:[#allocation8] sm:$0xff]
    %v116 = vld [vmem:[#allocation8 + $0x8] sm:$0xff]
    %v117 = vld [vmem:[#allocation8 + $0x10] sm:$0xff]
    %v118 = vld [vmem:[#allocation8 + $0x18] sm:$0xff]
    %v119 = vld [vmem:[#allocation8 + $0x20] sm:$0xff]
    %v120 = vld [vmem:[#allocation8 + $0x28] sm:$0xff]
    %v121 = vld [vmem:[#allocation8 + $0x30] sm:$0xff]
    %v122 = vld [vmem:[#allocation8 + $0x38] sm:$0xff]
    %v123 = vld [vmem:[#allocation8 + $0x40] sm:$0xff]
    %v124 = vld [vmem:[#allocation8 + $0x48] sm:$0xff]
    %v125 = vld [vmem:[#allocation8 + $0x50] sm:$0xff]
    %v126 = vld [vmem:[#allocation8 + $0x58] sm:$0xff]
    %v127 = vld [vmem:[#allocation8 + $0x60] sm:$0xff]
    %v128 = vld [vmem:[#allocation8 + $0x68] sm:$0xff]
    %v129 = vld [vmem:[#allocation8 + $0x70] sm:$0xff]
    %v130 = vld [vmem:[#allocation8 + $0x78] sm:$0xff]
    %v131 = vld [vmem:[#allocation8 + $0x80] sm:$0xff]
    %v132 = vld [vmem:[#allocation8 + $0x88] sm:$0xff]
    %v133 = vld [vmem:[#allocation8 + $0x90] sm:$0xff]
    %v134 = vld [vmem:[#allocation8 + $0x98] sm:$0xff]
    %v135 = vld [vmem:[#allocation8 + $0xa0] sm:$0xff]
    %v136 = vld [vmem:[#allocation8 + $0xa8] sm:$0xff]
    %v137 = vld [vmem:[#allocation8 + $0xb0] sm:$0xff]
    %v138 = vld [vmem:[#allocation8 + $0xb8] sm:$0xff]
    %v139 = vld [vmem:[#allocation8 + $0xc0] sm:$0xff]
    %v140 = vld [vmem:[#allocation8 + $0xc8] sm:$0xff]
    %v141 = vld [vmem:[#allocation8 + $0xd0] sm:$0xff]
    %v142 = vld [vmem:[#allocation8 + $0xd8] sm:$0xff]
    %v143 = vld [vmem:[#allocation8 + $0xe0] sm:$0xff]
    %v144 = vld [vmem:[#allocation8 + $0xe8] sm:$0xff]
    %v145 = vld [vmem:[#allocation8 + $0xf0] sm:$0xff]
    %v146 = vld [vmem:[#allocation8 + $0xf8] sm:$0xff]
    %v147 = vld [vmem:[#allocation8 + $0x100] sm:$0xff]
    %v148 = vld [vmem:[#allocation8 + $0x108] sm:$0xff]
    %v149 = vld [vmem:[#allocation8 + $0x110] sm:$0xff]
    %v150 = vld [vmem:[#allocation8 + $0x118] sm:$0xff]
    %v151 = vld [vmem:[#allocation8 + $0x120] sm:$0xff]
    %v152 = vld [vmem:[#allocation8 + $0x128] sm:$0xff]
    %v153 = vld [vmem:[#allocation8 + $0x130] sm:$0xff]
    %v154 = vld [vmem:[#allocation8 + $0x138] sm:$0xff]
    %v155 = vld [vmem:[#allocation8 + $0x140] sm:$0xff]
    %v156 = vld [vmem:[#allocation8 + $0x148] sm:$0xff]
    %v157 = vld [vmem:[#allocation8 + $0x150] sm:$0xff]
    %v158 = vld [vmem:[#allocation8 + $0x158] sm:$0xff]
    %v159 = vld [vmem:[#allocation8 + $0x160] sm:$0xff]
    %v160 = vld [vmem:[#allocation8 + $0x168] sm:$0xff]
    %v161 = vld [vmem:[#allocation8 + $0x170] sm:$0xff]
    %v162 = vld [vmem:[#allocation8 + $0x178] sm:$0xff]
    %v163 = vld [vmem:[%s3] sm:$0x1]
    %v164 = vld [vmem:[%s4] sm:$0x1]
    %v165 = vld [vmem:[#allocation2] sm:$0xff]
    %v166 = vld [vmem:[#allocation2 + $0x8] sm:$0xff]
    %v167 = vld [vmem:[#allocation2 + $0x18] sm:$0xff]
    %v168 = vld [vmem:[#allocation2 + $0x20] sm:$0xff]
    %v169 = vld [vmem:[#allocation2 + $0x1] sm:$0xff]
    %v170 = vld [vmem:[#allocation2 + $0x9] sm:$0xff]
    %v171 = vld [vmem:[#allocation2 + $0x19] sm:$0xff]
    %v172 = vld [vmem:[#allocation2 + $0x21] sm:$0xff]
    %v173 = vld [vmem:[#allocation2 + $0x2] sm:$0xff]
    %v174 = vld [vmem:[#allocation2 + $0xa] sm:$0xff]
    %v175 = vld [vmem:[#allocation2 + $0x1a] sm:$0xff]
    %v176 = vld [vmem:[#allocation2 + $0x22] sm:$0xff]
    %177 = vmatprep.subr.mxu0 0.0
    %178 = vmatpush1.msra.mxu0 %v130
    %179 = vmatprep.subr.mxu0 0.0
    %180 = vmatpush1.msra.mxu0 %v129
    %181 = vmatprep.subr.mxu0 0.0
    %182 = vmatpush1.msra.mxu0 %v128
    %183 = vmatprep.subr.mxu0 0.0
    %184 = vmatpush1.msra.mxu0 %v127
    %185 = vmatprep.subr.mxu0 0.0
    %186 = vmatpush1.msra.mxu0 %v126
    %187 = vmatprep.subr.mxu0 0.0
    %188 = vmatpush1.msra.mxu0 %v125
    %189 = vmatprep.subr.mxu0 0.0
    %190 = vmatpush1.msra.mxu0 %v124
    %191 = vmatprep.subr.mxu0 0.0
    %192 = vmatpush1.msra.mxu0 %v123
    %193 = vmatprep.subr.mxu0 0.0
    %194 = vmatpush1.msra.mxu0 %v122
    %195 = vmatprep.subr.mxu0 0.0
    %196 = vmatpush1.msra.mxu0 %v121
    %197 = vmatprep.subr.mxu0 0.0
    %198 = vmatpush1.msra.mxu0 %v120
    %199 = vmatprep.subr.mxu0 0.0
    %200 = vmatpush1.msra.mxu0 %v119
    %201 = vmatprep.subr.mxu0 0.0
    %202 = vmatpush1.msra.mxu0 %v118
    %203 = vmatprep.subr.mxu0 0.0
    %204 = vmatpush1.msra.mxu0 %v117
    %205 = vmatprep.subr.mxu0 0.0
    %206 = vmatpush1.msra.mxu0 %v116
    %207 = vmatprep.subr.mxu0 0.0
    %208 = vmatpush1.msra.mxu0 %v115
    %209 = vmatprep.subr.mxu0 0.0
    %210 = vmatpush2.msra.mxu0 %v146
    %211 = vmatprep.subr.mxu0 0.0
    %212 = vmatpush2.msra.mxu0 %v145
    %213 = vmatprep.subr.mxu0 0.0
    %214 = vmatpush2.msra.mxu0 %v144
    %215 = vmatprep.subr.mxu0 0.0
    %216 = vmatpush2.msra.mxu0 %v143
    %217 = vmatprep.subr.mxu0 0.0
    %218 = vmatpush2.msra.mxu0 %v142
    %219 = vmatprep.subr.mxu0 0.0
    %220 = vmatpush2.msra.mxu0 %v141
    %221 = vmatprep.subr.mxu0 0.0
    %222 = vmatpush2.msra.mxu0 %v140
    %223 = vmatprep.subr.mxu0 0.0
    %224 = vmatpush2.msra.mxu0 %v139
    %225 = vmatprep.subr.mxu0 0.0
    %226 = vmatpush2.msra.mxu0 %v138
    %227 = vmatprep.subr.mxu0 0.0
    %228 = vmatpush2.msra.mxu0 %v137
    %229 = vmatprep.subr.mxu0 0.0
    %230 = vmatpush2.msra.mxu0 %v136
    %231 = vmatprep.subr.mxu0 0.0
    %232 = vmatpush2.msra.mxu0 %v135
    %233 = vmatprep.subr.mxu0 0.0
    %234 = vmatpush2.msra.mxu0 %v134
    %235 = vmatprep.subr.mxu0 0.0
    %236 = vmatpush2.msra.mxu0 %v133
    %237 = vmatprep.subr.mxu0 0.0
    %238 = vmatpush2.msra.mxu0 %v132
    %239 = vmatprep.subr.mxu0 0.0
    %240 = vmatpush2.msra.mxu0 %v131
    %241 = vmatprep.mubr.f32.mxu0 %v169
    %242 = vmatmul.mubr.f32.gmra.mxu0 %v165
    %v243 = vpop.f32.mrf.mxu0
    %v244 = vadd.f32 0.0, %v243
    %v245 = vpop.f32.mrf.mxu0
    %246 = vmatprep.mubr.f32.mxu0 %v170
    %247 = vmatmul.mubr.f32.gmra.mxu0 %v166
    %v248 = vpop.f32.mrf.mxu0
    %v249 = vadd.f32 0.0, %v248
    %v250 = vpop.f32.mrf.mxu0
    %251 = vmatprep.mubr.f32.mxu0 %v171
    %252 = vmatmul.mubr.f32.gmra.mxu0 %v167
    %v253 = vpop.f32.mrf.mxu0
    %v254 = vadd.f32 0.0, %v253
    %v255 = vpop.f32.mrf.mxu0
    %256 = vmatprep.mubr.f32.mxu0 %v172
    %257 = vmatmul.mubr.f32.gmra.mxu0 %v168
    %v258 = vpop.f32.mrf.mxu0
    %v259 = vadd.f32 0.0, %v258
    %v260 = vpop.f32.mrf.mxu0
    %261 = vdwg.mxu0
    %262 = vmatprep.subr.mxu0 0.0
    %263 = vmatpush1.msra.mxu0 %v162
    %264 = vmatprep.subr.mxu0 0.0
    %265 = vmatpush1.msra.mxu0 %v161
    %266 = vmatprep.subr.mxu0 0.0
    %267 = vmatpush1.msra.mxu0 %v160
    %268 = vmatprep.subr.mxu0 0.0
    %269 = vmatpush1.msra.mxu0 %v159
    %270 = vmatprep.subr.mxu0 0.0
    %271 = vmatpush1.msra.mxu0 %v158
    %272 = vmatprep.subr.mxu0 0.0
    %273 = vmatpush1.msra.mxu0 %v157
    %274 = vmatprep.subr.mxu0 0.0
    %275 = vmatpush1.msra.mxu0 %v156
    %276 = vmatprep.subr.mxu0 0.0
    %277 = vmatpush1.msra.mxu0 %v155
    %278 = vmatprep.subr.mxu0 0.0
    %279 = vmatpush1.msra.mxu0 %v154
    %280 = vmatprep.subr.mxu0 0.0
    %281 = vmatpush1.msra.mxu0 %v153
    %282 = vmatprep.subr.mxu0 0.0
    %283 = vmatpush1.msra.mxu0 %v152
    %284 = vmatprep.subr.mxu0 0.0
    %285 = vmatpush1.msra.mxu0 %v151
    %286 = vmatprep.subr.mxu0 0.0
    %287 = vmatpush1.msra.mxu0 %v150
    %288 = vmatprep.subr.mxu0 0.0
    %289 = vmatpush1.msra.mxu0 %v149
    %290 = vmatprep.subr.mxu0 0.0
    %291 = vmatpush1.msra.mxu0 %v148
    %292 = vmatprep.subr.mxu0 0.0
    %293 = vmatpush1.msra.mxu0 %v147
    %294 = vmatprep.subr.mxu0 0.0
    %295 = vmatpush2.msra.mxu0 0.0
    %296 = vmatprep.subr.mxu0 0.0
    %297 = vmatpush2.msra.mxu0 0.0
    %298 = vmatprep.subr.mxu0 0.0
    %299 = vmatpush2.msra.mxu0 0.0
    %300 = vmatprep.subr.mxu0 0.0
    %301 = vmatpush2.msra.mxu0 0.0
    %302 = vmatprep.subr.mxu0 0.0
    %303 = vmatpush2.msra.mxu0 0.0
    %304 = vmatprep.subr.mxu0 0.0
    %305 = vmatpush2.msra.mxu0 0.0
    %306 = vmatprep.subr.mxu0 0.0
    %307 = vmatpush2.msra.mxu0 0.0
    %308 = vmatprep.subr.mxu0 0.0
    %309 = vmatpush2.msra.mxu0 0.0
    %310 = vmatprep.subr.mxu0 0.0
    %311 = vmatpush2.msra.mxu0 0.0
    %312 = vmatprep.subr.mxu0 0.0
    %313 = vmatpush2.msra.mxu0 0.0
    %314 = vmatprep.subr.mxu0 0.0
    %315 = vmatpush2.msra.mxu0 0.0
    %316 = vmatprep.subr.mxu0 0.0
    %317 = vmatpush2.msra.mxu0 0.0
    %318 = vmatprep.subr.mxu0 0.0
    %319 = vmatpush2.msra.mxu0 0.0
    %320 = vmatprep.subr.mxu0 0.0
    %321 = vmatpush2.msra.mxu0 0.0
    %322 = vmatprep.subr.mxu0 0.0
    %323 = vmatpush2.msra.mxu0 0.0
    %324 = vmatprep.subr.mxu0 0.0
    %325 = vmatpush2.msra.mxu0 0.0
    %326 = vmatprep.mubr.f32.mxu0 0.0
    %327 = vmatmul.mubr.f32.gmra.mxu0 %v173
    %v328 = vpop.f32.mrf.mxu0
    %v329 = vadd.f32 %v244, %v328
    %v330 = vpop.f32.mrf.mxu0
    %331 = vmatprep.mubr.f32.mxu0 0.0
    %332 = vmatmul.mubr.f32.gmra.mxu0 %v174
    %v333 = vpop.f32.mrf.mxu0
    %v334 = vadd.f32 %v249, %v333
    %v335 = vpop.f32.mrf.mxu0
    %336 = vmatprep.mubr.f32.mxu0 0.0
    %337 = vmatmul.mubr.f32.gmra.mxu0 %v175
    %v338 = vpop.f32.mrf.mxu0
    %v339 = vadd.f32 %v254, %v338
    %v340 = vpop.f32.mrf.mxu0
    %341 = vmatprep.mubr.f32.mxu0 0.0
    %342 = vmatmul.mubr.f32.gmra.mxu0 %v176
    %v343 = vpop.f32.mrf.mxu0
    %v344 = vadd.f32 %v259, %v343
    %v345 = vpop.f32.mrf.mxu0
    %346 = vdwg.mxu0
    %v347 = vadd.f32 %v329, %v334
    %v348 = vadd.f32 %v347, %v339
    %v349 = vadd.f32 %v348, %v344
    %v350 = vrot.slane %v349, 4
    %v351 = vadd.f32 %v349, %v350
    %v352 = vrot.slane %v351, 2
    %v353 = vadd.f32 %v351, %v352
    %v354 = vrot.slane %v353, 1
    %v355 = vadd.f32 %v353, %v354
    %356 = vmatprep.subr.mxu0 0.0
    %357 = vmatpush1.msra.mxu0 %v114
    %358 = vmatprep.subr.mxu0 0.0
    %359 = vmatpush1.msra.mxu0 %v113
    %360 = vmatprep.subr.mxu0 0.0
    %361 = vmatpush1.msra.mxu0 %v112
    %362 = vmatprep.subr.mxu0 0.0
    %363 = vmatpush1.msra.mxu0 %v111
    %364 = vmatprep.subr.mxu0 0.0
    %365 = vmatpush1.msra.mxu0 %v110
    %366 = vmatprep.subr.mxu0 0.0
    %367 = vmatpush1.msra.mxu0 %v109
    %368 = vmatprep.subr.mxu0 0.0
    %369 = vmatpush1.msra.mxu0 %v108
    %370 = vmatprep.subr.mxu0 0.0
    %371 = vmatpush1.msra.mxu0 %v107
    %372 = vmatprep.subr.mxu0 0.0
    %373 = vmatpush1.msra.mxu0 %v106
    %374 = vmatprep.subr.mxu0 0.0
    %375 = vmatpush1.msra.mxu0 %v105
    %376 = vmatprep.subr.mxu0 0.0
    %377 = vmatpush1.msra.mxu0 %v104
    %378 = vmatprep.subr.mxu0 0.0
    %379 = vmatpush1.msra.mxu0 %v103
    %380 = vmatprep.subr.mxu0 0.0
    %381 = vmatpush1.msra.mxu0 %v102
    %382 = vmatprep.subr.mxu0 0.0
    %383 = vmatpush1.msra.mxu0 %v101
    %384 = vmatprep.subr.mxu0 0.0
    %385 = vmatpush1.msra.mxu0 %v100
    %386 = vmatprep.subr.mxu0 0.0
    %387 = vmatpush1.msra.mxu0 %v99
    %388 = vmatprep.subr.mxu0 0.0
    %389 = vmatpush2.msra.mxu0 0.0
    %390 = vmatprep.subr.mxu0 0.0
    %391 = vmatpush2.msra.mxu0 0.0
    %392 = vmatprep.subr.mxu0 0.0
    %393 = vmatpush2.msra.mxu0 0.0
    %394 = vmatprep.subr.mxu0 0.0
    %395 = vmatpush2.msra.mxu0 0.0
    %396 = vmatprep.subr.mxu0 0.0
    %397 = vmatpush2.msra.mxu0 0.0
    %398 = vmatprep.subr.mxu0 0.0
    %399 = vmatpush2.msra.mxu0 0.0
    %400 = vmatprep.subr.mxu0 0.0
    %401 = vmatpush2.msra.mxu0 0.0
    %402 = vmatprep.subr.mxu0 0.0
    %403 = vmatpush2.msra.mxu0 0.0
    %404 = vmatprep.subr.mxu0 0.0
    %405 = vmatpush2.msra.mxu0 0.0
    %406 = vmatprep.subr.mxu0 0.0
    %407 = vmatpush2.msra.mxu0 0.0
    %408 = vmatprep.subr.mxu0 0.0
    %409 = vmatpush2.msra.mxu0 0.0
    %410 = vmatprep.subr.mxu0 0.0
    %411 = vmatpush2.msra.mxu0 0.0
    %412 = vmatprep.subr.mxu0 0.0
    %413 = vmatpush2.msra.mxu0 0.0
    %414 = vmatprep.subr.mxu0 0.0
    %415 = vmatpush2.msra.mxu0 0.0
    %416 = vmatprep.subr.mxu0 0.0
    %417 = vmatpush2.msra.mxu0 0.0
    %418 = vmatprep.subr.mxu0 0.0
    %419 = vmatpush2.msra.mxu0 0.0
    %420 = vmatprep.mubr.f32.mxu0 0.0
    %421 = vmatmul.mubr.f32.gmra.mxu0 %v355
    %v422 = vpop.f32.mrf.mxu0
    %v423 = vadd.f32 0.0, %v422
    %v424 = vpop.f32.mrf.mxu0
    %425 = vdwg.mxu0
    %v426 = vmul.f32 %v423, 0.001953125
    %v427 = vlaneseq
    %v428 = vshrl.u32 %v427, 7
    %v429 = vsub.s32 0, %v428
    %v430 = vrot.slane %v426, %v429
    %v431 = vsub.f32 %v329, %v430
    %v432 = vsub.f32 %v334, %v430
    %v433 = vsub.f32 %v339, %v430
    %v434 = vsub.f32 %v344, %v430
    %v435 = vmul.f32 %v431, %v431
    %v436 = vmul.f32 %v432, %v432
    %v437 = vmul.f32 %v433, %v433
    %v438 = vmul.f32 %v434, %v434
    %v439 = vadd.f32 %v435, %v436
    %v440 = vadd.f32 %v439, %v437
    %v441 = vadd.f32 %v440, %v438
    %v442 = vrot.slane %v441, 4
    %v443 = vadd.f32 %v441, %v442
    %v444 = vrot.slane %v443, 2
    %v445 = vadd.f32 %v443, %v444
    %v446 = vrot.slane %v445, 1
    %v447 = vadd.f32 %v445, %v446
    %448 = vmatprep.subr.mxu0 0.0
    %449 = vmatpush1.msra.mxu0 %v114
    %450 = vmatprep.subr.mxu0 0.0
    %451 = vmatpush1.msra.mxu0 %v113
    %452 = vmatprep.subr.mxu0 0.0
    %453 = vmatpush1.msra.mxu0 %v112
    %454 = vmatprep.subr.mxu0 0.0
    %455 = vmatpush1.msra.mxu0 %v111
    %456 = vmatprep.subr.mxu0 0.0
    %457 = vmatpush1.msra.mxu0 %v110
    %458 = vmatprep.subr.mxu0 0.0
    %459 = vmatpush1.msra.mxu0 %v109
    %460 = vmatprep.subr.mxu0 0.0
    %461 = vmatpush1.msra.mxu0 %v108
    %462 = vmatprep.subr.mxu0 0.0
    %463 = vmatpush1.msra.mxu0 %v107
    %464 = vmatprep.subr.mxu0 0.0
    %465 = vmatpush1.msra.mxu0 %v106
    %466 = vmatprep.subr.mxu0 0.0
    %467 = vmatpush1.msra.mxu0 %v105
    %468 = vmatprep.subr.mxu0 0.0
    %469 = vmatpush1.msra.mxu0 %v104
    %470 = vmatprep.subr.mxu0 0.0
    %471 = vmatpush1.msra.mxu0 %v103
    %472 = vmatprep.subr.mxu0 0.0
    %473 = vmatpush1.msra.mxu0 %v102
    %474 = vmatprep.subr.mxu0 0.0
    %475 = vmatpush1.msra.mxu0 %v101
    %476 = vmatprep.subr.mxu0 0.0
    %477 = vmatpush1.msra.mxu0 %v100
    %478 = vmatprep.subr.mxu0 0.0
    %479 = vmatpush1.msra.mxu0 %v99
    %480 = vmatprep.subr.mxu0 0.0
    %481 = vmatpush2.msra.mxu0 0.0
    %482 = vmatprep.subr.mxu0 0.0
    %483 = vmatpush2.msra.mxu0 0.0
    %484 = vmatprep.subr.mxu0 0.0
    %485 = vmatpush2.msra.mxu0 0.0
    %486 = vmatprep.subr.mxu0 0.0
    %487 = vmatpush2.msra.mxu0 0.0
    %488 = vmatprep.subr.mxu0 0.0
    %489 = vmatpush2.msra.mxu0 0.0
    %490 = vmatprep.subr.mxu0 0.0
    %491 = vmatpush2.msra.mxu0 0.0
    %492 = vmatprep.subr.mxu0 0.0
    %493 = vmatpush2.msra.mxu0 0.0
    %494 = vmatprep.subr.mxu0 0.0
    %495 = vmatpush2.msra.mxu0 0.0
    %496 = vmatprep.subr.mxu0 0.0
    %497 = vmatpush2.msra.mxu0 0.0
    %498 = vmatprep.subr.mxu0 0.0
    %499 = vmatpush2.msra.mxu0 0.0
    %500 = vmatprep.subr.mxu0 0.0
    %501 = vmatpush2.msra.mxu0 0.0
    %502 = vmatprep.subr.mxu0 0.0
    %503 = vmatpush2.msra.mxu0 0.0
    %504 = vmatprep.subr.mxu0 0.0
    %505 = vmatpush2.msra.mxu0 0.0
    %506 = vmatprep.subr.mxu0 0.0
    %507 = vmatpush2.msra.mxu0 0.0
    %508 = vmatprep.subr.mxu0 0.0
    %509 = vmatpush2.msra.mxu0 0.0
    %510 = vmatprep.subr.mxu0 0.0
    %511 = vmatpush2.msra.mxu0 0.0
    %512 = vmatprep.mubr.f32.mxu0 0.0
    %513 = vmatmul.mubr.f32.gmra.mxu0 %v447
    %v514 = vpop.f32.mrf.mxu0
    %v515 = vadd.f32 0.0, %v514
    %v516 = vpop.f32.mrf.mxu0
    %517 = vdwg.mxu0
    %v518 = vmul.f32 %v515, 0.001953125
    %v519 = vadd.f32 %v518, 1e-05
    %v520 = vrsqrt.pop %v519
    %v521 = vmul.f32 %v163, %v520
    %v523 = vlaneseq
    %v524 = vshrl.u32 %v523, 7
    %v525 = vsub.s32 0, %v524
    %v526 = vrot.slane %v521, %v525
    %v528 = vmul.f32 %v431, %v526
    %v529 = vmul.f32 %v432, %v526
    %v530 = vmul.f32 %v433, %v526
    %v531 = vmul.f32 %v434, %v526
    %v533 = vlaneseq
    %v534 = vshrl.u32 %v533, 7
    %v535 = vsub.s32 0, %v534
    %v536 = vrot.slane %v164, %v535
    %v538 = vadd.f32 %v528, %v536
    %v539 = vadd.f32 %v529, %v536
    %v540 = vadd.f32 %v530, %v536
    %v541 = vadd.f32 %v531, %v536
    %v542 = vmax.f32 %v538, 0.0
    %v543 = vmax.f32 %v539, 0.0
    %v544 = vmax.f32 %v540, 0.0
    %v545 = vmax.f32 %v541, 0.0
    %546 = vst [vmem:[#allocation2 + $0x1] sm:$0xff] %v542
    %547 = vst [vmem:[#allocation2 + $0x9] sm:$0xff] %v543
    %548 = vst [vmem:[#allocation2 + $0x19] sm:$0xff] %v544
    %549 = vst [vmem:[#allocation2 + $0x21] sm:$0xff] %v545
    %v550 = vld [vmem:[#allocation9] sm:$0xff]
    %v551 = vld [vmem:[#allocation9 + $0x8] sm:$0xff]
    %v552 = vld [vmem:[#allocation9 + $0x10] sm:$0xff]
    %v553 = vld [vmem:[#allocation9 + $0x18] sm:$0xff]
    %v554 = vld [vmem:[#allocation9 + $0x20] sm:$0xff]
    %v555 = vld [vmem:[#allocation9 + $0x28] sm:$0xff]
    %v556 = vld [vmem:[#allocation9 + $0x30] sm:$0xff]
    %v557 = vld [vmem:[#allocation9 + $0x38] sm:$0xff]
    %v558 = vld [vmem:[#allocation9 + $0x40] sm:$0xff]
    %v559 = vld [vmem:[#allocation9 + $0x48] sm:$0xff]
    %v560 = vld [vmem:[#allocation9 + $0x50] sm:$0xff]
    %v561 = vld [vmem:[#allocation9 + $0x58] sm:$0xff]
    %v562 = vld [vmem:[#allocation9 + $0x60] sm:$0xff]
    %v563 = vld [vmem:[#allocation9 + $0x68] sm:$0xff]
    %v564 = vld [vmem:[#allocation9 + $0x70] sm:$0xff]
    %v565 = vld [vmem:[#allocation9 + $0x78] sm:$0xff]
    %v566 = vld [vmem:[#allocation9 + $0x80] sm:$0xff]
    %v567 = vld [vmem:[#allocation9 + $0x88] sm:$0xff]
    %v568 = vld [vmem:[#allocation9 + $0x90] sm:$0xff]
    %v569 = vld [vmem:[#allocation9 + $0x98] sm:$0xff]
    %v570 = vld [vmem:[#allocation9 + $0xa0] sm:$0xff]
    %v571 = vld [vmem:[#allocation9 + $0xa8] sm:$0xff]
    %v572 = vld [vmem:[#allocation9 + $0xb0] sm:$0xff]
    %v573 = vld [vmem:[#allocation9 + $0xb8] sm:$0xff]
    %v574 = vld [vmem:[#allocation9 + $0xc0] sm:$0xff]
    %v575 = vld [vmem:[#allocation9 + $0xc8] sm:$0xff]
    %v576 = vld [vmem:[#allocation9 + $0xd0] sm:$0xff]
    %v577 = vld [vmem:[#allocation9 + $0xd8] sm:$0xff]
    %v578 = vld [vmem:[#allocation9 + $0xe0] sm:$0xff]
    %v579 = vld [vmem:[#allocation9 + $0xe8] sm:$0xff]
    %v580 = vld [vmem:[#allocation9 + $0xf0] sm:$0xff]
    %v581 = vld [vmem:[#allocation9 + $0xf8] sm:$0xff]
    %v582 = vld [vmem:[#allocation9 + $0x100] sm:$0xff]
    %v583 = vld [vmem:[#allocation9 + $0x108] sm:$0xff]
    %v584 = vld [vmem:[#allocation9 + $0x110] sm:$0xff]
    %v585 = vld [vmem:[#allocation9 + $0x118] sm:$0xff]
    %v586 = vld [vmem:[#allocation9 + $0x120] sm:$0xff]
    %v587 = vld [vmem:[#allocation9 + $0x128] sm:$0xff]
    %v588 = vld [vmem:[#allocation9 + $0x130] sm:$0xff]
    %v589 = vld [vmem:[#allocation9 + $0x138] sm:$0xff]
    %v590 = vld [vmem:[#allocation9 + $0x140] sm:$0xff]
    %v591 = vld [vmem:[#allocation9 + $0x148] sm:$0xff]
    %v592 = vld [vmem:[#allocation9 + $0x150] sm:$0xff]
    %v593 = vld [vmem:[#allocation9 + $0x158] sm:$0xff]
    %v594 = vld [vmem:[#allocation9 + $0x160] sm:$0xff]
    %v595 = vld [vmem:[#allocation9 + $0x168] sm:$0xff]
    %v596 = vld [vmem:[#allocation9 + $0x170] sm:$0xff]
    %v597 = vld [vmem:[#allocation9 + $0x178] sm:$0xff]
    %v598 = vld [vmem:[%s6] sm:$0x1]
    %v599 = vld [vmem:[%s7] sm:$0x1]
    %v600 = vld [vmem:[#allocation2] sm:$0xff]
    %v601 = vld [vmem:[#allocation2 + $0x8] sm:$0xff]
    %v602 = vld [vmem:[#allocation2 + $0x18] sm:$0xff]
    %v603 = vld [vmem:[#allocation2 + $0x20] sm:$0xff]
    %v604 = vld [vmem:[#allocation2 + $0x1] sm:$0xff]
    %v605 = vld [vmem:[#allocation2 + $0x9] sm:$0xff]
    %v606 = vld [vmem:[#allocation2 + $0x19] sm:$0xff]
    %v607 = vld [vmem:[#allocation2 + $0x21] sm:$0xff]
    %v608 = vld [vmem:[#allocation2 + $0x2] sm:$0xff]
    %v609 = vld [vmem:[#allocation2 + $0xa] sm:$0xff]
    %v610 = vld [vmem:[#allocation2 + $0x1a] sm:$0xff]
    %v611 = vld [vmem:[#allocation2 + $0x22] sm:$0xff]
    %612 = vmatprep.subr.mxu0 0.0
    %613 = vmatpush1.msra.mxu0 %v565
    %614 = vmatprep.subr.mxu0 0.0
    %615 = vmatpush1.msra.mxu0 %v564
    %616 = vmatprep.subr.mxu0 0.0
    %617 = vmatpush1.msra.mxu0 %v563
    %618 = vmatprep.subr.mxu0 0.0
    %619 = vmatpush1.msra.mxu0 %v562
    %620 = vmatprep.subr.mxu0 0.0
    %621 = vmatpush1.msra.mxu0 %v561
    %622 = vmatprep.subr.mxu0 0.0
    %623 = vmatpush1.msra.mxu0 %v560
    %624 = vmatprep.subr.mxu0 0.0
    %625 = vmatpush1.msra.mxu0 %v559
    %626 = vmatprep.subr.mxu0 0.0
    %627 = vmatpush1.msra.mxu0 %v558
    %628 = vmatprep.subr.mxu0 0.0
    %629 = vmatpush1.msra.mxu0 %v557
    %630 = vmatprep.subr.mxu0 0.0
    %631 = vmatpush1.msra.mxu0 %v556
    %632 = vmatprep.subr.mxu0 0.0
    %633 = vmatpush1.msra.mxu0 %v555
    %634 = vmatprep.subr.mxu0 0.0
    %635 = vmatpush1.msra.mxu0 %v554
    %636 = vmatprep.subr.mxu0 0.0
    %637 = vmatpush1.msra.mxu0 %v553
    %638 = vmatprep.subr.mxu0 0.0
    %639 = vmatpush1.msra.mxu0 %v552
    %640 = vmatprep.subr.mxu0 0.0
    %641 = vmatpush1.msra.mxu0 %v551
    %642 = vmatprep.subr.mxu0 0.0
    %643 = vmatpush1.msra.mxu0 %v550
    %644 = vmatprep.subr.mxu0 0.0
    %645 = vmatpush2.msra.mxu0 %v581
    %646 = vmatprep.subr.mxu0 0.0
    %647 = vmatpush2.msra.mxu0 %v580
    %648 = vmatprep.subr.mxu0 0.0
    %649 = vmatpush2.msra.mxu0 %v579
    %650 = vmatprep.subr.mxu0 0.0
    %651 = vmatpush2.msra.mxu0 %v578
    %652 = vmatprep.subr.mxu0 0.0
    %653 = vmatpush2.msra.mxu0 %v577
    %654 = vmatprep.subr.mxu0 0.0
    %655 = vmatpush2.msra.mxu0 %v576
    %656 = vmatprep.subr.mxu0 0.0
    %657 = vmatpush2.msra.mxu0 %v575
    %658 = vmatprep.subr.mxu0 0.0
    %659 = vmatpush2.msra.mxu0 %v574
    %660 = vmatprep.subr.mxu0 0.0
    %661 = vmatpush2.msra.mxu0 %v573
    %662 = vmatprep.subr.mxu0 0.0
    %663 = vmatpush2.msra.mxu0 %v572
    %664 = vmatprep.subr.mxu0 0.0
    %665 = vmatpush2.msra.mxu0 %v571
    %666 = vmatprep.subr.mxu0 0.0
    %667 = vmatpush2.msra.mxu0 %v570
    %668 = vmatprep.subr.mxu0 0.0
    %669 = vmatpush2.msra.mxu0 %v569
    %670 = vmatprep.subr.mxu0 0.0
    %671 = vmatpush2.msra.mxu0 %v568
    %672 = vmatprep.subr.mxu0 0.0
    %673 = vmatpush2.msra.mxu0 %v567
    %674 = vmatprep.subr.mxu0 0.0
    %675 = vmatpush2.msra.mxu0 %v566
    %676 = vmatprep.mubr.f32.mxu0 %v604
    %677 = vmatmul.mubr.f32.gmra.mxu0 %v600
    %v678 = vpop.f32.mrf.mxu0
    %v679 = vadd.f32 0.0, %v678
    %v680 = vpop.f32.mrf.mxu0
    %681 = vmatprep.mubr.f32.mxu0 %v605
    %682 = vmatmul.mubr.f32.gmra.mxu0 %v601
    %v683 = vpop.f32.mrf.mxu0
    %v684 = vadd.f32 0.0, %v683
    %v685 = vpop.f32.mrf.mxu0
    %686 = vmatprep.mubr.f32.mxu0 %v606
    %687 = vmatmul.mubr.f32.gmra.mxu0 %v602
    %v688 = vpop.f32.mrf.mxu0
    %v689 = vadd.f32 0.0, %v688
    %v690 = vpop.f32.mrf.mxu0
    %691 = vmatprep.mubr.f32.mxu0 %v607
    %692 = vmatmul.mubr.f32.gmra.mxu0 %v603
    %v693 = vpop.f32.mrf.mxu0
    %v694 = vadd.f32 0.0, %v693
    %v695 = vpop.f32.mrf.mxu0
    %696 = vdwg.mxu0
    %697 = vmatprep.subr.mxu0 0.0
    %698 = vmatpush1.msra.mxu0 %v597
    %699 = vmatprep.subr.mxu0 0.0
    %700 = vmatpush1.msra.mxu0 %v596
    %701 = vmatprep.subr.mxu0 0.0
    %702 = vmatpush1.msra.mxu0 %v595
    %703 = vmatprep.subr.mxu0 0.0
    %704 = vmatpush1.msra.mxu0 %v594
    %705 = vmatprep.subr.mxu0 0.0
    %706 = vmatpush1.msra.mxu0 %v593
    %707 = vmatprep.subr.mxu0 0.0
    %708 = vmatpush1.msra.mxu0 %v592
    %709 = vmatprep.subr.mxu0 0.0
    %710 = vmatpush1.msra.mxu0 %v591
    %711 = vmatprep.subr.mxu0 0.0
    %712 = vmatpush1.msra.mxu0 %v590
    %713 = vmatprep.subr.mxu0 0.0
    %714 = vmatpush1.msra.mxu0 %v589
    %715 = vmatprep.subr.mxu0 0.0
    %716 = vmatpush1.msra.mxu0 %v588
    %717 = vmatprep.subr.mxu0 0.0
    %718 = vmatpush1.msra.mxu0 %v587
    %719 = vmatprep.subr.mxu0 0.0
    %720 = vmatpush1.msra.mxu0 %v586
    %721 = vmatprep.subr.mxu0 0.0
    %722 = vmatpush1.msra.mxu0 %v585
    %723 = vmatprep.subr.mxu0 0.0
    %724 = vmatpush1.msra.mxu0 %v584
    %725 = vmatprep.subr.mxu0 0.0
    %726 = vmatpush1.msra.mxu0 %v583
    %727 = vmatprep.subr.mxu0 0.0
    %728 = vmatpush1.msra.mxu0 %v582
    %729 = vmatprep.subr.mxu0 0.0
    %730 = vmatpush2.msra.mxu0 0.0
    %731 = vmatprep.subr.mxu0 0.0
    %732 = vmatpush2.msra.mxu0 0.0
    %733 = vmatprep.subr.mxu0 0.0
    %734 = vmatpush2.msra.mxu0 0.0
    %735 = vmatprep.subr.mxu0 0.0
    %736 = vmatpush2.msra.mxu0 0.0
    %737 = vmatprep.subr.mxu0 0.0
    %738 = vmatpush2.msra.mxu0 0.0
    %739 = vmatprep.subr.mxu0 0.0
    %740 = vmatpush2.msra.mxu0 0.0
    %741 = vmatprep.subr.mxu0 0.0
    %742 = vmatpush2.msra.mxu0 0.0
    %743 = vmatprep.subr.mxu0 0.0
    %744 = vmatpush2.msra.mxu0 0.0
    %745 = vmatprep.subr.mxu0 0.0
    %746 = vmatpush2.msra.mxu0 0.0
    %747 = vmatprep.subr.mxu0 0.0
    %748 = vmatpush2.msra.mxu0 0.0
    %749 = vmatprep.subr.mxu0 0.0
    %750 = vmatpush2.msra.mxu0 0.0
    %751 = vmatprep.subr.mxu0 0.0
    %752 = vmatpush2.msra.mxu0 0.0
    %753 = vmatprep.subr.mxu0 0.0
    %754 = vmatpush2.msra.mxu0 0.0
    %755 = vmatprep.subr.mxu0 0.0
    %756 = vmatpush2.msra.mxu0 0.0
    %757 = vmatprep.subr.mxu0 0.0
    %758 = vmatpush2.msra.mxu0 0.0
    %759 = vmatprep.subr.mxu0 0.0
    %760 = vmatpush2.msra.mxu0 0.0
    %761 = vmatprep.mubr.f32.mxu0 0.0
    %762 = vmatmul.mubr.f32.gmra.mxu0 %v608
    %v763 = vpop.f32.mrf.mxu0
    %v764 = vadd.f32 %v679, %v763
    %v765 = vpop.f32.mrf.mxu0
    %766 = vmatprep.mubr.f32.mxu0 0.0
    %767 = vmatmul.mubr.f32.gmra.mxu0 %v609
    %v768 = vpop.f32.mrf.mxu0
    %v769 = vadd.f32 %v684, %v768
    %v770 = vpop.f32.mrf.mxu0
    %771 = vmatprep.mubr.f32.mxu0 0.0
    %772 = vmatmul.mubr.f32.gmra.mxu0 %v610
    %v773 = vpop.f32.mrf.mxu0
    %v774 = vadd.f32 %v689, %v773
    %v775 = vpop.f32.mrf.mxu0
    %776 = vmatprep.mubr.f32.mxu0 0.0
    %777 = vmatmul.mubr.f32.gmra.mxu0 %v611
    %v778 = vpop.f32.mrf.mxu0
    %v779 = vadd.f32 %v694, %v778
    %v780 = vpop.f32.mrf.mxu0
    %781 = vdwg.mxu0
    %v782 = vadd.f32 %v764, %v769
    %v783 = vadd.f32 %v782, %v774
    %v784 = vadd.f32 %v783, %v779
    %v785 = vrot.slane %v784, 4
    %v786 = vadd.f32 %v784, %v785
    %v787 = vrot.slane %v786, 2
    %v788 = vadd.f32 %v786, %v787
    %v789 = vrot.slane %v788, 1
    %v790 = vadd.f32 %v788, %v789
    %791 = vmatprep.subr.mxu0 0.0
    %792 = vmatpush1.msra.mxu0 %v114
    %793 = vmatprep.subr.mxu0 0.0
    %794 = vmatpush1.msra.mxu0 %v113
    %795 = vmatprep.subr.mxu0 0.0
    %796 = vmatpush1.msra.mxu0 %v112
    %797 = vmatprep.subr.mxu0 0.0
    %798 = vmatpush1.msra.mxu0 %v111
    %799 = vmatprep.subr.mxu0 0.0
    %800 = vmatpush1.msra.mxu0 %v110
    %801 = vmatprep.subr.mxu0 0.0
    %802 = vmatpush1.msra.mxu0 %v109
    %803 = vmatprep.subr.mxu0 0.0
    %804 = vmatpush1.msra.mxu0 %v108
    %805 = vmatprep.subr.mxu0 0.0
    %806 = vmatpush1.msra.mxu0 %v107
    %807 = vmatprep.subr.mxu0 0.0
    %808 = vmatpush1.msra.mxu0 %v106
    %809 = vmatprep.subr.mxu0 0.0
    %810 = vmatpush1.msra.mxu0 %v105
    %811 = vmatprep.subr.mxu0 0.0
    %812 = vmatpush1.msra.mxu0 %v104
    %813 = vmatprep.subr.mxu0 0.0
    %814 = vmatpush1.msra.mxu0 %v103
    %815 = vmatprep.subr.mxu0 0.0
    %816 = vmatpush1.msra.mxu0 %v102
    %817 = vmatprep.subr.mxu0 0.0
    %818 = vmatpush1.msra.mxu0 %v101
    %819 = vmatprep.subr.mxu0 0.0
    %820 = vmatpush1.msra.mxu0 %v100
    %821 = vmatprep.subr.mxu0 0.0
    %822 = vmatpush1.msra.mxu0 %v99
    %823 = vmatprep.subr.mxu0 0.0
    %824 = vmatpush2.msra.mxu0 0.0
    %825 = vmatprep.subr.mxu0 0.0
    %826 = vmatpush2.msra.mxu0 0.0
    %827 = vmatprep.subr.mxu0 0.0
    %828 = vmatpush2.msra.mxu0 0.0
    %829 = vmatprep.subr.mxu0 0.0
    %830 = vmatpush2.msra.mxu0 0.0
    %831 = vmatprep.subr.mxu0 0.0
    %832 = vmatpush2.msra.mxu0 0.0
    %833 = vmatprep.subr.mxu0 0.0
    %834 = vmatpush2.msra.mxu0 0.0
    %835 = vmatprep.subr.mxu0 0.0
    %836 = vmatpush2.msra.mxu0 0.0
    %837 = vmatprep.subr.mxu0 0.0
    %838 = vmatpush2.msra.mxu0 0.0
    %839 = vmatprep.subr.mxu0 0.0
    %840 = vmatpush2.msra.mxu0 0.0
    %841 = vmatprep.subr.mxu0 0.0
    %842 = vmatpush2.msra.mxu0 0.0
    %843 = vmatprep.subr.mxu0 0.0
    %844 = vmatpush2.msra.mxu0 0.0
    %845 = vmatprep.subr.mxu0 0.0
    %846 = vmatpush2.msra.mxu0 0.0
    %847 = vmatprep.subr.mxu0 0.0
    %848 = vmatpush2.msra.mxu0 0.0
    %849 = vmatprep.subr.mxu0 0.0
    %850 = vmatpush2.msra.mxu0 0.0
    %851 = vmatprep.subr.mxu0 0.0
    %852 = vmatpush2.msra.mxu0 0.0
    %853 = vmatprep.subr.mxu0 0.0
    %854 = vmatpush2.msra.mxu0 0.0
    %855 = vmatprep.mubr.f32.mxu0 0.0
    %856 = vmatmul.mubr.f32.gmra.mxu0 %v790
    %v857 = vpop.f32.mrf.mxu0
    %v858 = vadd.f32 0.0, %v857
    %v859 = vpop.f32.mrf.mxu0
    %860 = vdwg.mxu0
    %v861 = vmul.f32 %v858, 0.001953125
    %v862 = vlaneseq
    %v863 = vshrl.u32 %v862, 7
    %v864 = vsub.s32 0, %v863
    %v865 = vrot.slane %v861, %v864
    %v866 = vsub.f32 %v764, %v865
    %v867 = vsub.f32 %v769, %v865
    %v868 = vsub.f32 %v774, %v865
    %v869 = vsub.f32 %v779, %v865
    %v870 = vmul.f32 %v866, %v866
    %v871 = vmul.f32 %v867, %v867
    %v872 = vmul.f32 %v868, %v868
    %v873 = vmul.f32 %v869, %v869
    %v874 = vadd.f32 %v870, %v871
    %v875 = vadd.f32 %v874, %v872
    %v876 = vadd.f32 %v875, %v873
    %v877 = vrot.slane %v876, 4
    %v878 = vadd.f32 %v876, %v877
    %v879 = vrot.slane %v878, 2
    %v880 = vadd.f32 %v878, %v879
    %v881 = vrot.slane %v880, 1
    %v882 = vadd.f32 %v880, %v881
    %883 = vmatprep.subr.mxu0 0.0
    %884 = vmatpush1.msra.mxu0 %v114
    %885 = vmatprep.subr.mxu0 0.0
    %886 = vmatpush1.msra.mxu0 %v113
    %887 = vmatprep.subr.mxu0 0.0
    %888 = vmatpush1.msra.mxu0 %v112
    %889 = vmatprep.subr.mxu0 0.0
    %890 = vmatpush1.msra.mxu0 %v111
    %891 = vmatprep.subr.mxu0 0.0
    %892 = vmatpush1.msra.mxu0 %v110
    %893 = vmatprep.subr.mxu0 0.0
    %894 = vmatpush1.msra.mxu0 %v109
    %895 = vmatprep.subr.mxu0 0.0
    %896 = vmatpush1.msra.mxu0 %v108
    %897 = vmatprep.subr.mxu0 0.0
    %898 = vmatpush1.msra.mxu0 %v107
    %899 = vmatprep.subr.mxu0 0.0
    %900 = vmatpush1.msra.mxu0 %v106
    %901 = vmatprep.subr.mxu0 0.0
    %902 = vmatpush1.msra.mxu0 %v105
    %903 = vmatprep.subr.mxu0 0.0
    %904 = vmatpush1.msra.mxu0 %v104
    %905 = vmatprep.subr.mxu0 0.0
    %906 = vmatpush1.msra.mxu0 %v103
    %907 = vmatprep.subr.mxu0 0.0
    %908 = vmatpush1.msra.mxu0 %v102
    %909 = vmatprep.subr.mxu0 0.0
    %910 = vmatpush1.msra.mxu0 %v101
    %911 = vmatprep.subr.mxu0 0.0
    %912 = vmatpush1.msra.mxu0 %v100
    %913 = vmatprep.subr.mxu0 0.0
    %914 = vmatpush1.msra.mxu0 %v99
    %915 = vmatprep.subr.mxu0 0.0
    %916 = vmatpush2.msra.mxu0 0.0
    %917 = vmatprep.subr.mxu0 0.0
    %918 = vmatpush2.msra.mxu0 0.0
    %919 = vmatprep.subr.mxu0 0.0
    %920 = vmatpush2.msra.mxu0 0.0
    %921 = vmatprep.subr.mxu0 0.0
    %922 = vmatpush2.msra.mxu0 0.0
    %923 = vmatprep.subr.mxu0 0.0
    %924 = vmatpush2.msra.mxu0 0.0
    %925 = vmatprep.subr.mxu0 0.0
    %926 = vmatpush2.msra.mxu0 0.0
    %927 = vmatprep.subr.mxu0 0.0
    %928 = vmatpush2.msra.mxu0 0.0
    %929 = vmatprep.subr.mxu0 0.0
    %930 = vmatpush2.msra.mxu0 0.0
    %931 = vmatprep.subr.mxu0 0.0
    %932 = vmatpush2.msra.mxu0 0.0
    %933 = vmatprep.subr.mxu0 0.0
    %934 = vmatpush2.msra.mxu0 0.0
    %935 = vmatprep.subr.mxu0 0.0
    %936 = vmatpush2.msra.mxu0 0.0
    %937 = vmatprep.subr.mxu0 0.0
    %938 = vmatpush2.msra.mxu0 0.0
    %939 = vmatprep.subr.mxu0 0.0
    %940 = vmatpush2.msra.mxu0 0.0
    %941 = vmatprep.subr.mxu0 0.0
    %942 = vmatpush2.msra.mxu0 0.0
    %943 = vmatprep.subr.mxu0 0.0
    %944 = vmatpush2.msra.mxu0 0.0
    %945 = vmatprep.subr.mxu0 0.0
    %946 = vmatpush2.msra.mxu0 0.0
    %947 = vmatprep.mubr.f32.mxu0 0.0
    %948 = vmatmul.mubr.f32.gmra.mxu0 %v882
    %v949 = vpop.f32.mrf.mxu0
    %v950 = vadd.f32 0.0, %v949
    %v951 = vpop.f32.mrf.mxu0
    %952 = vdwg.mxu0
    %v953 = vmul.f32 %v950, 0.001953125
    %v954 = vadd.f32 %v953, 1e-05
    %v955 = vrsqrt.pop %v954
    %v956 = vmul.f32 %v598, %v955
    %v958 = vlaneseq
    %v959 = vshrl.u32 %v958, 7
    %v960 = vsub.s32 0, %v959
    %v961 = vrot.slane %v956, %v960
    %v963 = vmul.f32 %v866, %v961
    %v964 = vmul.f32 %v867, %v961
    %v965 = vmul.f32 %v868, %v961
    %v966 = vmul.f32 %v869, %v961
    %v968 = vlaneseq
    %v969 = vshrl.u32 %v968, 7
    %v970 = vsub.s32 0, %v969
    %v971 = vrot.slane %v599, %v970
    %v973 = vadd.f32 %v963, %v971
    %v974 = vadd.f32 %v964, %v971
    %v975 = vadd.f32 %v965, %v971
    %v976 = vadd.f32 %v966, %v971
    %v977 = vmax.f32 %v973, 0.0
    %v978 = vmax.f32 %v974, 0.0
    %v979 = vmax.f32 %v975, 0.0
    %v980 = vmax.f32 %v976, 0.0
    %981 = vst [vmem:[#allocation11] sm:$0xff] %v977
    %982 = vst [vmem:[#allocation11 + $0x8] sm:$0xff] %v978
    %983 = vst [vmem:[#allocation11 + $0x10] sm:$0xff] %v979
    %984 = vst [vmem:[#allocation11 + $0x18] sm:$0xff] %v980
    // Predicated region
    $region50: #{tpu_custom_call.1} parent=1 // pred_check
      _
    $region51: #{tpu_custom_call.1} parent=1 // pred_check_branch
      %986 = sbr.rel (0) target = $region53
    $region52: #{tpu_custom_call.1} parent=1 // pred_region
      %s988 = ssub.s32 512, 512
      %989 = vsyncadd [#allocation5], %s988
      %s990 = sshll.u32 [#allocation11], 4
      %s991 = int_to_ptr.vmem [resolvable:$true] %s990
      %996 = dma.vmem_to_hbm [thread:$0]  %s991, 512, %s8, [#allocation5], 128, 128, 8
    $region53: #{tpu_custom_call.1} parent=1 // pred_fallthru
      _
    // Predicated region
    $region54: #{tpu_custom_call.1} parent=1 // pred_check
      _
    $region55: #{tpu_custom_call.1} parent=1 // pred_check_branch
      %998 = sbr.rel (0) target = $region57
    $region56: #{tpu_custom_call.1} parent=1 // pred_region
      %999 = dma.done [#allocation5], 512
    $region57: #{tpu_custom_call.1} parent=1 // pred_fallthru
      _
    %1000 = vsyncpa [#allocation4], 1
    %1001 = vsyncpa [#allocation7], 1
    %1002 = vsyncpa [#allocation10], 1
    %1003 = vsyncpa [#allocation5], 1

</llo_original>
